<compile_context>
chip_gen: v7x
topology: tpu7x:2x2x1
jax: 0.10.0
libtpu: 0.0.40
codegen_flags: <defaults>
</compile_context>

<pallas_src>
import jax
import jax.numpy as jnp
import numpy as np
from jax.experimental import pallas as pl
from jax.experimental.pallas import tpu as pltpu


def _bilinear_matrix(out_size: int, in_size: int) -> np.ndarray:
    """1-D interpolation matrix matching F.interpolate(mode='bilinear',
    align_corners=False) along one axis: out = M @ in."""
    dst = np.arange(out_size, dtype=np.float64)
    src = (dst + 0.5) * (in_size / out_size) - 0.5
    src = np.clip(src, 0.0, None)
    i0 = np.minimum(np.floor(src).astype(np.int64), in_size - 1)
    i1 = np.minimum(i0 + 1, in_size - 1)
    lam = src - i0
    m = np.zeros((out_size, in_size), dtype=np.float64)
    m[np.arange(out_size), i0] += 1.0 - lam
    m[np.arange(out_size), i1] += lam
    return m


def _is_pow2(n: int) -> bool:
    return n > 0 and (n & (n - 1)) == 0


def _physical_vmem_bytes() -> int:
    try:
        cap = getattr(pltpu.get_tpu_info(), "vmem_capacity_bytes", None)
        if cap:
            return int(cap)
    except Exception:
        pass
    return 64 * 1024 * 1024  # conservative: v7x per-TensorCore VMEM


def _select_tiles(B, C, H, W, D, N, GS_h, GS_w, interp_bytes, out_bytes, cg_est, budget):
    """Largest (tile_c, tile_h) divisors of (C, H) whose VMEM footprint fits the budget.

    tile_c must be a multiple of 8 (sublane dim of the weight/bias blocks) or equal C;
    tile_h must be a multiple of 8 (sublane dim of the Mh/output blocks) or equal H.
    """

    def usage(tc, th):
        u = 2 * D * N * 2                      # x^T block (bf16), double-buffered
        u += 2 * tc * D * 2                    # head-weight tile (bf16)
        u += 2 * tc * 4                        # bias tile (f32)
        u += 2 * GS_w * W * interp_bytes       # Mw^T (resident)
        u += 2 * th * GS_h * interp_bytes      # Mh tile
        u += 2 * tc * th * W * out_bytes       # output block (dominant), double-buffered
        u += GS_h * tc * W * 2                 # width-pass scratch (bf16)
        u += tc * N * 4                        # head/width f32 intermediate
        u += th * cg_est * W * 4               # height-pass group intermediate (f32)
        return u

    c_divs = [d for d in range(C, 0, -1) if C % d == 0 and (d % 8 == 0 or d == C)]
    h_divs = [d for d in range(H, 0, -1) if H % d == 0 and (d % 8 == 0 or d == H)]

    feasible = []
    for tc in c_divs:
        for th in h_divs:                      # descending: first fit = largest tile_h
            if usage(tc, th) <= budget:
                feasible.append((tc, th))
                break
    if not feasible:                           # degenerate config: smallest legal tiles
        return c_divs[-1], h_divs[-1]

    # v7x megacore: keep >= 2 units of "parallel" grid work (B * n_c) when possible.
    if B < 2:
        multi = [t for t in feasible if C // t[0] >= 2]
        if multi:
            feasible = multi

    # Prefer the largest output block (HBM-writeback efficiency), then the largest
    # class tile (head-matmul MXU M-dim fill).
    feasible.sort(key=lambda t: (t[0] * t[1], t[0]), reverse=True)
    return feasible[0]


def decoder_linear_forward(x, w, b, n_cls, patch_size, im_size, out_dtype=jnp.float32):
    """DecoderLinear.forward.

    x: (B, N, D) f32 tokens; w: (D, C) head weight (transposed torch layout); b: (C,).
    Returns (B, C, H, W) in `out_dtype` (float32 matches the PyTorch module)."""
    B, N, D = x.shape
    H, W = im_size
    GS_h = H // patch_size
    GS_w = N // GS_h
    assert GS_h * GS_w == N, "token count must equal GS_h * GS_w"
    C = n_cls
    assert w.shape == (D, C) and b.shape == (C,)

    # Interpolation matrices: bf16 only when exactly representable (power-of-two factor).
    exact = (H % GS_h == 0 and W % GS_w == 0
             and _is_pow2(H // GS_h) and _is_pow2(W // GS_w)
             and H // GS_h <= 128 and W // GS_w <= 128)
    interp_dtype = jnp.bfloat16 if exact else jnp.float32
    mh = jnp.asarray(_bilinear_matrix(H, GS_h), dtype=interp_dtype)     # (H, GS_h)
    mwT = jnp.asarray(_bilinear_matrix(W, GS_w).T, dtype=interp_dtype)  # (GS_w, W)

    # bf16 MXU operands; transposing the small x / w here is cheap layout plumbing.
    xt = x.astype(jnp.bfloat16).transpose(0, 2, 1)                      # (B, D, N)
    wT = w.astype(jnp.bfloat16).T                                       # (C, D)
    b2 = b.astype(jnp.float32).reshape(C, 1)                            # (C, 1)

    out_bytes = np.dtype(out_dtype).itemsize
    interp_bytes = np.dtype(interp_dtype).itemsize

    # VMEM budget per generation (v7x: 64 MiB physical; v5e/v6e: 128 MiB).
    phys_vmem = _physical_vmem_bytes()
    vmem_limit = max(32 * 2**20, min(int(phys_vmem * 0.8), 100 * 2**20))
    cg_est = max(8, 2048 // max(W, 1))
    tile_c, tile_h = _select_tiles(B, C, H, W, D, N, GS_h, GS_w,
                                   interp_bytes, out_bytes, cg_est,
                                   budget=int(vmem_limit * 0.8))
    n_c = C // tile_c
    n_h = H // tile_h
    cg = max(1, min(tile_c, cg_est))            # channels per height-pass matmul group

    def kernel(xt_ref, w_ref, b_ref, mwT_ref, mh_ref, o_ref, t1_ref):
        hi = pl.program_id(2)

        # Head matmul + width interpolation: once per (batch, class-tile).  Valid only
        # because the H axis is the innermost, sequential ("arbitrary") grid axis.
        @pl.when(hi == 0)
        def _():
            # (tile_c, D) @ (D, N) -> (tile_c, N), f32 accumulation on the MXU.
            y = jnp.dot(w_ref[...], xt_ref[0], preferred_element_type=jnp.float32)
            y = (y + b_ref[...]).astype(t1_ref.dtype)
            mwT_blk = mwT_ref[...]                                    # (GS_w, W)
            for p in range(GS_h):
                yp = y[:, p * GS_w:(p + 1) * GS_w]                    # (tile_c, GS_w)
                t1_ref[p] = jnp.dot(
                    yp, mwT_blk, preferred_element_type=jnp.float32
                ).astype(t1_ref.dtype)                                # (tile_c, W)

        # Height interpolation, batched over channel groups:
        # one (tile_h, GS_h) @ (GS_h, cg*W) matmul per group instead of tile_c tiny ones.
        mh_blk = mh_ref[...]                                          # (tile_h, GS_h)
        for cs in range(0, tile_c, cg):
            g = min(cg, tile_c - cs)
            tg = t1_ref[:, cs:cs + g, :].reshape(GS_h, g * W)         # (GS_h, g*W)
            r = jnp.dot(mh_blk, tg, preferred_element_type=jnp.float32)
            for c in range(g):
                o_ref[0, cs + c] = r[:, c * W:(c + 1) * W].astype(o_ref.dtype)

    flops = 2 * B * C * (D * N + GS_h * GS_w * W + GS_h * H * W)
    bytes_accessed = (B * N * D * 2 + C * D * 2
                      + B * C * H * W * out_bytes
                      + (H * GS_h + GS_w * W) * interp_bytes)
    cost = pl.CostEstimate(flops=flops, transcendentals=0, bytes_accessed=bytes_accessed)

    out = pl.pallas_call(
        kernel,
        out_shape=jax.ShapeDtypeStruct((B, C, H, W), out_dtype),
        grid_spec=pltpu.PrefetchScalarGridSpec(
            num_scalar_prefetch=0,
            grid=(B, n_c, n_h),
            in_specs=[
                pl.BlockSpec((1, D, N), lambda bi, ci, hi: (bi, 0, 0)),    # x^T (per-batch resident)
                pl.BlockSpec((tile_c, D), lambda bi, ci, hi: (ci, 0)),     # head weight tile
                pl.BlockSpec((tile_c, 1), lambda bi, ci, hi: (ci, 0)),     # bias tile
                pl.BlockSpec((GS_w, W), lambda bi, ci, hi: (0, 0)),        # Mw^T (resident)
                pl.BlockSpec((tile_h, GS_h), lambda bi, ci, hi: (hi, 0)),  # Mh row tile
            ],
            out_specs=pl.BlockSpec(
                (1, tile_c, tile_h, W), lambda bi, ci, hi: (bi, ci, hi, 0)
            ),
            scratch_shapes=[pltpu.VMEM((GS_h, tile_c, W), jnp.bfloat16)],  # width-pass result
        ),
        compiler_params=pltpu.CompilerParams(
            # H axis must remain innermost + "arbitrary": the scratch written at hi == 0
            # is reused by every H tile of the same (batch, class-tile).
            dimension_semantics=("parallel", "parallel", "arbitrary"),
            vmem_limit_bytes=vmem_limit,
        ),
        cost_estimate=cost,
    )(xt, wT, b2, mwT, mh)
    return out


if __name__ == "__main__":
    # Small config: n_cls=8, patch_size=4, d_encoder=32, im_size=(16, 16) -> GS=4, N=16.
    n_cls, patch_size, d_encoder = 8, 4, 32
    im_size = (16, 16)
    GS = im_size[0] // patch_size
    B, N = 2, GS * GS

    key = jax.random.PRNGKey(0)
    kx, kw, kb = jax.random.split(key, 3)
    x = jax.random.normal(kx, (B, N, d_encoder), dtype=jnp.float32)
    # nn.Linear(d_encoder, n_cls): torch weight is (n_cls, d_encoder); stored transposed.
    w = jax.random.normal(kw, (d_encoder, n_cls), dtype=jnp.float32) * (1.0 / np.sqrt(d_encoder))
    b = jax.random.normal(kb, (n_cls,), dtype=jnp.float32) * 0.01

    out = decoder_linear_forward(x, w, b, n_cls, patch_size, im_size)
    out = jax.block_until_ready(out)

    # Pure-JAX f32 reference of the same math (head -> NCHW -> separable bilinear).
    mh_f = jnp.asarray(_bilinear_matrix(im_size[0], GS), dtype=jnp.float32)
    mw_f = jnp.asarray(_bilinear_matrix(im_size[1], GS), dtype=jnp.float32)
    y_ref = x @ w + b                                   # (B, N, C)
    yg = y_ref.reshape(B, GS, GS, n_cls)                # (B, h, w, C)
    ref = jnp.einsum("ip,jq,bpqc->bcij", mh_f, mw_f, yg)

    assert out.shape == (B, n_cls, *im_size)
    # bf16 operands / intermediates with f32 accumulation -> loosened tolerance vs pure f32.
    np.testing.assert_allclose(np.asarray(out), np.asarray(ref), rtol=3e-2, atol=3e-2)

    print("KERNEL_OK")
</pallas_src>

<mosaic_0001>
module attributes {stable_mosaic.version = 11 : i64} {
  func.func @kernel(%arg0: i32, %arg1: i32, %arg2: i32, %arg3: memref<1x32x16xbf16, #tpu.memory_space<vmem>>, %arg4: memref<8x32xbf16, #tpu.memory_space<vmem>>, %arg5: memref<8x1xf32, #tpu.memory_space<vmem>>, %arg6: memref<4x16xbf16, #tpu.memory_space<vmem>>, %arg7: memref<16x4xbf16, #tpu.memory_space<vmem>>, %arg8: memref<1x8x16x16xf32, #tpu.memory_space<vmem>>, %arg9: memref<4x8x16xbf16, #tpu.memory_space<vmem>>) attributes {dimension_semantics = [#tpu.dimension_semantics<parallel>, #tpu.dimension_semantics<parallel>, #tpu.dimension_semantics<arbitrary>], iteration_bounds = array<i64: 2, 1, 1>, scalar_prefetch = 0 : i64, scratch_operands = 1 : i64, tpu.core_type = #tpu.core_type<tc>, window_params = [{transform_indices = @transform_0, window_bounds = array<i64: 1, 32, 16>}, {transform_indices = @transform_1, window_bounds = array<i64: 8, 32>}, {transform_indices = @transform_2, window_bounds = array<i64: 8, 1>}, {pipeline_mode = #tpu.pipeline_mode<synchronous>, transform_indices = @transform_3, window_bounds = array<i64: 4, 16>}, {transform_indices = @transform_4, window_bounds = array<i64: 16, 4>}, {transform_indices = @transform_5, window_bounds = array<i64: 1, 8, 16, 16>}]} {
    %c0_i32 = arith.constant 0 : i32
    %0 = arith.cmpi eq, %arg2, %c0_i32 : i32
    %1 = arith.extui %0 : i1 to i32
    %c0_i32_0 = arith.constant 0 : i32
    %2 = arith.cmpi ne, %1, %c0_i32_0 : i32
    scf.if %2 {
      %c0_30 = arith.constant 0 : index
      %c0_31 = arith.constant 0 : index
      %39 = vector.load %arg4[%c0_30, %c0_31] : memref<8x32xbf16, #tpu.memory_space<vmem>>, vector<8x32xbf16>
      %c0_32 = arith.constant 0 : index
      %c0_33 = arith.constant 0 : index
      %c0_34 = arith.constant 0 : index
      %40 = vector.load %arg3[%c0_32, %c0_33, %c0_34] : memref<1x32x16xbf16, #tpu.memory_space<vmem>>, vector<1x32x16xbf16>
      %41 = vector.shape_cast %40 : vector<1x32x16xbf16> to vector<32x16xbf16>
      %cst_35 = arith.constant dense<0.000000e+00> : vector<8x16xf32>
      %42 = tpu.matmul %39, %41, %cst_35 {dimension_numbers = #tpu.dot_dimension_numbers<[1], [0], [0], [1], [0, 0, 1, 1], [], []>} : vector<8x32xbf16>, vector<32x16xbf16>, vector<8x16xf32> -> vector<8x16xf32>
      %c0_36 = arith.constant 0 : index
      %c0_37 = arith.constant 0 : index
      %43 = vector.load %arg5[%c0_36, %c0_37] : memref<8x1xf32, #tpu.memory_space<vmem>>, vector<8x1xf32>
      %44 = vector.broadcast %43 : vector<8x1xf32> to vector<8x16xf32>
      %45 = arith.addf %42, %44 : vector<8x16xf32>
      %46 = arith.truncf %45 : vector<8x16xf32> to vector<8x16xbf16>
      %c0_38 = arith.constant 0 : index
      %c0_39 = arith.constant 0 : index
      %47 = vector.load %arg6[%c0_38, %c0_39] : memref<4x16xbf16, #tpu.memory_space<vmem>>, vector<4x16xbf16>
      %48 = vector.extract_strided_slice %46 {offsets = [0, 0], sizes = [8, 4], strides = [1, 1]} : vector<8x16xbf16> to vector<8x4xbf16>
      %cst_40 = arith.constant dense<0.000000e+00> : vector<8x16xf32>
      %49 = tpu.matmul %48, %47, %cst_40 {dimension_numbers = #tpu.dot_dimension_numbers<[1], [0], [0], [1], [0, 0, 1, 1], [], []>} : vector<8x4xbf16>, vector<4x16xbf16>, vector<8x16xf32> -> vector<8x16xf32>
      %50 = arith.truncf %49 : vector<8x16xf32> to vector<8x16xbf16>
      %c0_41 = arith.constant 0 : index
      %c0_42 = arith.constant 0 : index
      %c0_43 = arith.constant 0 : index
      %51 = vector.load %arg9[%c0_41, %c0_42, %c0_43] : memref<4x8x16xbf16, #tpu.memory_space<vmem>>, vector<1x8x16xbf16>
      %52 = vector.shape_cast %51 : vector<1x8x16xbf16> to vector<8x16xbf16>
      %53 = vector.shape_cast %50 : vector<8x16xbf16> to vector<1x8x16xbf16>
      tpu.vector_store %arg9[%c0_41, %c0_42, %c0_43], %53 {strides = array<i32>} : memref<4x8x16xbf16, #tpu.memory_space<vmem>>, vector<1x8x16xbf16>,
      %54 = vector.extract_strided_slice %46 {offsets = [0, 4], sizes = [8, 4], strides = [1, 1]} : vector<8x16xbf16> to vector<8x4xbf16>
      %cst_44 = arith.constant dense<0.000000e+00> : vector<8x16xf32>
      %55 = tpu.matmul %54, %47, %cst_44 {dimension_numbers = #tpu.dot_dimension_numbers<[1], [0], [0], [1], [0, 0, 1, 1], [], []>} : vector<8x4xbf16>, vector<4x16xbf16>, vector<8x16xf32> -> vector<8x16xf32>
      %56 = arith.truncf %55 : vector<8x16xf32> to vector<8x16xbf16>
      %c1_45 = arith.constant 1 : index
      %c0_46 = arith.constant 0 : index
      %c0_47 = arith.constant 0 : index
      %57 = vector.load %arg9[%c1_45, %c0_46, %c0_47] : memref<4x8x16xbf16, #tpu.memory_space<vmem>>, vector<1x8x16xbf16>
      %58 = vector.shape_cast %57 : vector<1x8x16xbf16> to vector<8x16xbf16>
      %59 = vector.shape_cast %56 : vector<8x16xbf16> to vector<1x8x16xbf16>
      tpu.vector_store %arg9[%c1_45, %c0_46, %c0_47], %59 {strides = array<i32>} : memref<4x8x16xbf16, #tpu.memory_space<vmem>>, vector<1x8x16xbf16>,
      %60 = vector.extract_strided_slice %46 {offsets = [0, 8], sizes = [8, 4], strides = [1, 1]} : vector<8x16xbf16> to vector<8x4xbf16>
      %cst_48 = arith.constant dense<0.000000e+00> : vector<8x16xf32>
      %61 = tpu.matmul %60, %47, %cst_48 {dimension_numbers = #tpu.dot_dimension_numbers<[1], [0], [0], [1], [0, 0, 1, 1], [], []>} : vector<8x4xbf16>, vector<4x16xbf16>, vector<8x16xf32> -> vector<8x16xf32>
      %62 = arith.truncf %61 : vector<8x16xf32> to vector<8x16xbf16>
      %c2_49 = arith.constant 2 : index
      %c0_50 = arith.constant 0 : index
      %c0_51 = arith.constant 0 : index
      %63 = vector.load %arg9[%c2_49, %c0_50, %c0_51] : memref<4x8x16xbf16, #tpu.memory_space<vmem>>, vector<1x8x16xbf16>
      %64 = vector.shape_cast %63 : vector<1x8x16xbf16> to vector<8x16xbf16>
      %65 = vector.shape_cast %62 : vector<8x16xbf16> to vector<1x8x16xbf16>
      tpu.vector_store %arg9[%c2_49, %c0_50, %c0_51], %65 {strides = array<i32>} : memref<4x8x16xbf16, #tpu.memory_space<vmem>>, vector<1x8x16xbf16>,
      %66 = vector.extract_strided_slice %46 {offsets = [0, 12], sizes = [8, 4], strides = [1, 1]} : vector<8x16xbf16> to vector<8x4xbf16>
      %cst_52 = arith.constant dense<0.000000e+00> : vector<8x16xf32>
      %67 = tpu.matmul %66, %47, %cst_52 {dimension_numbers = #tpu.dot_dimension_numbers<[1], [0], [0], [1], [0, 0, 1, 1], [], []>} : vector<8x4xbf16>, vector<4x16xbf16>, vector<8x16xf32> -> vector<8x16xf32>
      %68 = arith.truncf %67 : vector<8x16xf32> to vector<8x16xbf16>
      %c3_53 = arith.constant 3 : index
      %c0_54 = arith.constant 0 : index
      %c0_55 = arith.constant 0 : index
      %69 = vector.load %arg9[%c3_53, %c0_54, %c0_55] : memref<4x8x16xbf16, #tpu.memory_space<vmem>>, vector<1x8x16xbf16>
      %70 = vector.shape_cast %69 : vector<1x8x16xbf16> to vector<8x16xbf16>
      %71 = vector.shape_cast %68 : vector<8x16xbf16> to vector<1x8x16xbf16>
      tpu.vector_store %arg9[%c3_53, %c0_54, %c0_55], %71 {strides = array<i32>} : memref<4x8x16xbf16, #tpu.memory_space<vmem>>, vector<1x8x16xbf16>,
    } else {
    }
    %c0 = arith.constant 0 : index
    %c0_1 = arith.constant 0 : index
    %3 = vector.load %arg7[%c0, %c0_1] : memref<16x4xbf16, #tpu.memory_space<vmem>>, vector<16x4xbf16>
    %c0_2 = arith.constant 0 : index
    %c0_3 = arith.constant 0 : index
    %c0_4 = arith.constant 0 : index
    %4 = vector.load %arg9[%c0_2, %c0_3, %c0_4] : memref<4x8x16xbf16, #tpu.memory_space<vmem>>, vector<4x8x16xbf16>
    %5 = vector.shape_cast %4 : vector<4x8x16xbf16> to vector<4x128xbf16>
    %cst = arith.constant dense<0.000000e+00> : vector<16x128xf32>
    %6 = tpu.matmul %3, %5, %cst {dimension_numbers = #tpu.dot_dimension_numbers<[1], [0], [0], [1], [0, 0, 1, 1], [], []>} : vector<16x4xbf16>, vector<4x128xbf16>, vector<16x128xf32> -> vector<16x128xf32>
    %7 = vector.extract_strided_slice %6 {offsets = [0, 0], sizes = [16, 16], strides = [1, 1]} : vector<16x128xf32> to vector<16x16xf32>
    %c0_5 = arith.constant 0 : index
    %c0_6 = arith.constant 0 : index
    %c0_7 = arith.constant 0 : index
    %c0_8 = arith.constant 0 : index
    %8 = vector.load %arg8[%c0_5, %c0_6, %c0_7, %c0_8] : memref<1x8x16x16xf32, #tpu.memory_space<vmem>>, vector<1x1x16x16xf32>
    %9 = vector.shape_cast %8 : vector<1x1x16x16xf32> to vector<16x16xf32>
    %10 = vector.shape_cast %7 : vector<16x16xf32> to vector<1x1x16x16xf32>
    tpu.vector_store %arg8[%c0_5, %c0_6, %c0_7, %c0_8], %10 {strides = array<i32>} : memref<1x8x16x16xf32, #tpu.memory_space<vmem>>, vector<1x1x16x16xf32>,
    %11 = vector.extract_strided_slice %6 {offsets = [0, 16], sizes = [16, 16], strides = [1, 1]} : vector<16x128xf32> to vector<16x16xf32>
    %c0_9 = arith.constant 0 : index
    %c1 = arith.constant 1 : index
    %c0_10 = arith.constant 0 : index
    %c0_11 = arith.constant 0 : index
    %12 = vector.load %arg8[%c0_9, %c1, %c0_10, %c0_11] : memref<1x8x16x16xf32, #tpu.memory_space<vmem>>, vector<1x1x16x16xf32>
    %13 = vector.shape_cast %12 : vector<1x1x16x16xf32> to vector<16x16xf32>
    %14 = vector.shape_cast %11 : vector<16x16xf32> to vector<1x1x16x16xf32>
    tpu.vector_store %arg8[%c0_9, %c1, %c0_10, %c0_11], %14 {strides = array<i32>} : memref<1x8x16x16xf32, #tpu.memory_space<vmem>>, vector<1x1x16x16xf32>,
    %15 = vector.extract_strided_slice %6 {offsets = [0, 32], sizes = [16, 16], strides = [1, 1]} : vector<16x128xf32> to vector<16x16xf32>
    %c0_12 = arith.constant 0 : index
    %c2 = arith.constant 2 : index
    %c0_13 = arith.constant 0 : index
    %c0_14 = arith.constant 0 : index
    %16 = vector.load %arg8[%c0_12, %c2, %c0_13, %c0_14] : memref<1x8x16x16xf32, #tpu.memory_space<vmem>>, vector<1x1x16x16xf32>
    %17 = vector.shape_cast %16 : vector<1x1x16x16xf32> to vector<16x16xf32>
    %18 = vector.shape_cast %15 : vector<16x16xf32> to vector<1x1x16x16xf32>
    tpu.vector_store %arg8[%c0_12, %c2, %c0_13, %c0_14], %18 {strides = array<i32>} : memref<1x8x16x16xf32, #tpu.memory_space<vmem>>, vector<1x1x16x16xf32>,
    %19 = vector.extract_strided_slice %6 {offsets = [0, 48], sizes = [16, 16], strides = [1, 1]} : vector<16x128xf32> to vector<16x16xf32>
    %c0_15 = arith.constant 0 : index
    %c3 = arith.constant 3 : index
    %c0_16 = arith.constant 0 : index
    %c0_17 = arith.constant 0 : index
    %20 = vector.load %arg8[%c0_15, %c3, %c0_16, %c0_17] : memref<1x8x16x16xf32, #tpu.memory_space<vmem>>, vector<1x1x16x16xf32>
    %21 = vector.shape_cast %20 : vector<1x1x16x16xf32> to vector<16x16xf32>
    %22 = vector.shape_cast %19 : vector<16x16xf32> to vector<1x1x16x16xf32>
    tpu.vector_store %arg8[%c0_15, %c3, %c0_16, %c0_17], %22 {strides = array<i32>} : memref<1x8x16x16xf32, #tpu.memory_space<vmem>>, vector<1x1x16x16xf32>,
    %23 = vector.extract_strided_slice %6 {offsets = [0, 64], sizes = [16, 16], strides = [1, 1]} : vector<16x128xf32> to vector<16x16xf32>
    %c0_18 = arith.constant 0 : index
    %c4 = arith.constant 4 : index
    %c0_19 = arith.constant 0 : index
    %c0_20 = arith.constant 0 : index
    %24 = vector.load %arg8[%c0_18, %c4, %c0_19, %c0_20] : memref<1x8x16x16xf32, #tpu.memory_space<vmem>>, vector<1x1x16x16xf32>
    %25 = vector.shape_cast %24 : vector<1x1x16x16xf32> to vector<16x16xf32>
    %26 = vector.shape_cast %23 : vector<16x16xf32> to vector<1x1x16x16xf32>
    tpu.vector_store %arg8[%c0_18, %c4, %c0_19, %c0_20], %26 {strides = array<i32>} : memref<1x8x16x16xf32, #tpu.memory_space<vmem>>, vector<1x1x16x16xf32>,
    %27 = vector.extract_strided_slice %6 {offsets = [0, 80], sizes = [16, 16], strides = [1, 1]} : vector<16x128xf32> to vector<16x16xf32>
    %c0_21 = arith.constant 0 : index
    %c5 = arith.constant 5 : index
    %c0_22 = arith.constant 0 : index
    %c0_23 = arith.constant 0 : index
    %28 = vector.load %arg8[%c0_21, %c5, %c0_22, %c0_23] : memref<1x8x16x16xf32, #tpu.memory_space<vmem>>, vector<1x1x16x16xf32>
    %29 = vector.shape_cast %28 : vector<1x1x16x16xf32> to vector<16x16xf32>
    %30 = vector.shape_cast %27 : vector<16x16xf32> to vector<1x1x16x16xf32>
    tpu.vector_store %arg8[%c0_21, %c5, %c0_22, %c0_23], %30 {strides = array<i32>} : memref<1x8x16x16xf32, #tpu.memory_space<vmem>>, vector<1x1x16x16xf32>,
    %31 = vector.extract_strided_slice %6 {offsets = [0, 96], sizes = [16, 16], strides = [1, 1]} : vector<16x128xf32> to vector<16x16xf32>
    %c0_24 = arith.constant 0 : index
    %c6 = arith.constant 6 : index
    %c0_25 = arith.constant 0 : index
    %c0_26 = arith.constant 0 : index
    %32 = vector.load %arg8[%c0_24, %c6, %c0_25, %c0_26] : memref<1x8x16x16xf32, #tpu.memory_space<vmem>>, vector<1x1x16x16xf32>
    %33 = vector.shape_cast %32 : vector<1x1x16x16xf32> to vector<16x16xf32>
    %34 = vector.shape_cast %31 : vector<16x16xf32> to vector<1x1x16x16xf32>
    tpu.vector_store %arg8[%c0_24, %c6, %c0_25, %c0_26], %34 {strides = array<i32>} : memref<1x8x16x16xf32, #tpu.memory_space<vmem>>, vector<1x1x16x16xf32>,
    %35 = vector.extract_strided_slice %6 {offsets = [0, 112], sizes = [16, 16], strides = [1, 1]} : vector<16x128xf32> to vector<16x16xf32>
    %c0_27 = arith.constant 0 : index
    %c7 = arith.constant 7 : index
    %c0_28 = arith.constant 0 : index
    %c0_29 = arith.constant 0 : index
    %36 = vector.load %arg8[%c0_27, %c7, %c0_28, %c0_29] : memref<1x8x16x16xf32, #tpu.memory_space<vmem>>, vector<1x1x16x16xf32>
    %37 = vector.shape_cast %36 : vector<1x1x16x16xf32> to vector<16x16xf32>
    %38 = vector.shape_cast %35 : vector<16x16xf32> to vector<1x1x16x16xf32>
    tpu.vector_store %arg8[%c0_27, %c7, %c0_28, %c0_29], %38 {strides = array<i32>} : memref<1x8x16x16xf32, #tpu.memory_space<vmem>>, vector<1x1x16x16xf32>,
    return
  }
  func.func @transform_0(%arg0: i32, %arg1: i32, %arg2: i32) -> (i32, i32, i32) {
    %c0_i32 = arith.constant 0 : i32
    %c0_i32_0 = arith.constant 0 : i32
    %c0_i32_1 = arith.constant 0 : i32
    return %arg0, %c0_i32, %c0_i32_0 : i32, i32, i32
  }
  func.func @transform_1(%arg0: i32, %arg1: i32, %arg2: i32) -> (i32, i32) {
    %c0_i32 = arith.constant 0 : i32
    %c0_i32_0 = arith.constant 0 : i32
    return %arg1, %c0_i32 : i32, i32
  }
  func.func @transform_2(%arg0: i32, %arg1: i32, %arg2: i32) -> (i32, i32) {
    %c0_i32 = arith.constant 0 : i32
    %c0_i32_0 = arith.constant 0 : i32
    return %arg1, %c0_i32 : i32, i32
  }
  func.func @transform_3(%arg0: i32, %arg1: i32, %arg2: i32) -> (i32, i32) {
    %c0_i32 = arith.constant 0 : i32
    %c0_i32_0 = arith.constant 0 : i32
    %c0_i32_1 = arith.constant 0 : i32
    return %c0_i32, %c0_i32_0 : i32, i32
  }
  func.func @transform_4(%arg0: i32, %arg1: i32, %arg2: i32) -> (i32, i32) {
    %c0_i32 = arith.constant 0 : i32
    %c0_i32_0 = arith.constant 0 : i32
    return %arg2, %c0_i32 : i32, i32
  }
  func.func @transform_5(%arg0: i32, %arg1: i32, %arg2: i32) -> (i32, i32, i32, i32) {
    %c0_i32 = arith.constant 0 : i32
    %c0_i32_0 = arith.constant 0 : i32
    return %arg0, %arg1, %arg2, %c0_i32 : i32, i32, i32, i32
  }
}

</mosaic_0001>

<llo_original>
// kernel: tpu_custom_call.1
$region0: #{tpu_custom_call.1}
  #allocation0 [shape = 'u32[]', space=smem, size = 0x4, offset = 0x4, fixed_abs, tag = 'smem constant byte address 0x4 - core index']
  #allocation1 [shape = 'u32[144,128]{1,0:T(1,128)}', space=vmem, size = 0x12000, scoped, tag = 'internal scratch']
  #allocation2 [shape = 'bf16[4,8,16]{2,1,0:T(8,128)(2,1)}', space=vmem, size = 0x2000, scoped, tag = 'scratch operand']
  %s0 = inlined_call_operand.vmem [shape: bf16[2,32,16], index: 0, kind: input, shape index: {}]
  %s1 = inlined_call_operand.vmem [shape: bf16[8,32], index: 1, kind: input, shape index: {}]
  %s2 = inlined_call_operand.vmem [shape: f32[8,1], index: 2, kind: input, shape index: {}]
  %s3 = inlined_call_operand.vmem [shape: bf16[4,16], index: 3, kind: input, shape index: {}]
  %s4 = inlined_call_operand.vmem [shape: bf16[16,4], index: 4, kind: input, shape index: {}]
  %s5 = inlined_call_operand.hbm [shape: f32[2,8,16,16], index: 5, kind: output, shape index: {}]
  %s6 = sld [smem:[#allocation0]]
  $region57: #{tpu_custom_call.1} parent=0
    _
  %s8 = ssub.s32 1, %s6
  %s9 = scalar_select 0, %s8, %s6
  $region1: #{tpu_custom_call.1} parent=0
    #allocation3 [shape = 'u8[131072]{0}', space=vmem, size = 0x20000, scoped, tag = 'output window, operand 0']
    #allocation4 [shape = 's32[2]{0}', space=sflag, size = 0x8, scoped, tag = 'scoped memory for tpu_custom_call.1']
    %10 = vsyncpa [#allocation4], 0
    %s11 = scalar_lea.sflag [#allocation4], 1
    %12 = vsyncpa %s11, 0
    loop: start=0, step=1, limit=4
    $region2: #{tpu_custom_call.1} parent=1 // loop_pre_header
      _
    $region3: #{tpu_custom_call.1} parent=1 // loop_header
      %s14 = sphi 0, %s18
      %p15 = scmp.ge.s32.totalorder %s14, 4
      %s21 = sphi 0, %s40
      %s22 = sphi 0, %s36
      %s23 = sphi 0, %s32
      %s24 = sphi 0, %s21
      %s25 = sphi 0, %s22
      %s26 = sphi 0, %s23
      %s27 = sphi 0, %s24
      %s28 = sphi 0, %s25
      %s29 = sphi 0, %s26
      %s43 = sphi 0, %s45
      %s46 = sphi 0, %s43
      %s47 = sphi 0, %s46
      %s63 = sphi 0, %s47
      %s69 = sphi 0, %s71
      %s72 = sphi 0, %s69
      %s73 = sphi 0, %s72
      %s89 = sphi 0, %s73
      %s95 = sphi 0, %s97
      %s98 = sphi 0, %s95
      %s99 = sphi 0, %s98
      %s115 = sphi 0, %s99
      %s119 = sphi 0, %s119
      %s121 = sphi 0, %s119
      %s122 = sphi 0, %s121
      %s136 = sphi 0, %s122
      %s142 = sphi 0, %s144
      %s145 = sphi 0, %s142
      %s146 = sphi 0, %s145
      %s162 = sphi 0, %s146
      %s172 = sphi 0, %s174
      %s175 = sphi 0, %s172
      %s176 = sphi 0, %s175
      %s192 = sphi 0, %s176
    $region4: #{tpu_custom_call.1} parent=1 // loop_header_branch
      %17 = sbr.rel (%p15) target = $region8
    $region5: #{tpu_custom_call.1} parent=1 // loop_body
      %s19 = ssub.s32 %s14, 1
      %s20 = ssub.s32 %s14, 2
      %s30 = sadd.s32 1, %s23
      %p31 = scmp.ge.s32.totalorder %s30, 1
      %s32 = scalar_select %p31, 0, %s30
      %s33 = sadd.s32 1, %s22
      %s34 = scalar_select %p31, %s33, %s22
      %p35 = scmp.ge.s32.totalorder %s34, 1
      %s36 = scalar_select %p35, 0, %s34
      %s37 = sadd.s32 1, %s21
      %s38 = scalar_select %p35, %s37, %s21
      %p39 = scmp.ge.s32.totalorder %s38, 2
      %s40 = scalar_select %p39, 0, %s38
      %s41 = ssub.s32 %s21, %s40
      %p42 = scmp.eq.s32.totalorder %s41, 0
      %s44 = sadd.s32 %s43, 1
      %s45 = scalar_select %p42, %s43, %s44
      %p48 = pneg %p42
      %p49 = scmp.eq.s32.totalorder %s14, 1
      %p50 = por %p48, %p49
      %p51 = scmp.ne.s32.totalorder %s43, %s46
      %p52 = scmp.eq.s32.totalorder %s14, 0
      %p53 = por %p51, %p52
      %p54 = scmp.ne.s32.totalorder %s43, %s46
      %p55 = scmp.eq.s32.totalorder %s19, 1
      %p56 = por %p54, %p55
      %p57 = scmp.ne.s32.totalorder %s46, %s47
      %p58 = scmp.eq.s32.totalorder %s19, 0
      %p59 = por %p57, %p58
      %p60 = scmp.ne.s32.totalorder %s46, %s47
      %p61 = scmp.eq.s32.totalorder %s20, 1
      %p62 = por %p60, %p61
      %p64 = scmp.ne.s32.totalorder %s47, %s63
      %p65 = scmp.eq.s32.totalorder %s20, 0
      %p66 = por %p64, %p65
      %s67 = ssub.s32 %s22, %s36
      %p68 = scmp.eq.s32.totalorder %s67, 0
      %s70 = sadd.s32 %s69, 1
      %s71 = scalar_select %p68, %s69, %s70
      %p74 = pneg %p68
      %p75 = scmp.eq.s32.totalorder %s14, 1
      %p76 = por %p74, %p75
      %p77 = scmp.ne.s32.totalorder %s69, %s72
      %p78 = scmp.eq.s32.totalorder %s14, 0
      %p79 = por %p77, %p78
      %p80 = scmp.ne.s32.totalorder %s69, %s72
      %p81 = scmp.eq.s32.totalorder %s19, 1
      %p82 = por %p80, %p81
      %p83 = scmp.ne.s32.totalorder %s72, %s73
      %p84 = scmp.eq.s32.totalorder %s19, 0
      %p85 = por %p83, %p84
      %p86 = scmp.ne.s32.totalorder %s72, %s73
      %p87 = scmp.eq.s32.totalorder %s20, 1
      %p88 = por %p86, %p87
      %p90 = scmp.ne.s32.totalorder %s73, %s89
      %p91 = scmp.eq.s32.totalorder %s20, 0
      %p92 = por %p90, %p91
      %s93 = ssub.s32 %s22, %s36
      %p94 = scmp.eq.s32.totalorder %s93, 0
      %s96 = sadd.s32 %s95, 1
      %s97 = scalar_select %p94, %s95, %s96
      %p100 = pneg %p94
      %p101 = scmp.eq.s32.totalorder %s14, 1
      %p102 = por %p100, %p101
      %p103 = scmp.ne.s32.totalorder %s95, %s98
      %p104 = scmp.eq.s32.totalorder %s14, 0
      %p105 = por %p103, %p104
      %p106 = scmp.ne.s32.totalorder %s95, %s98
      %p107 = scmp.eq.s32.totalorder %s19, 1
      %p108 = por %p106, %p107
      %p109 = scmp.ne.s32.totalorder %s98, %s99
      %p110 = scmp.eq.s32.totalorder %s19, 0
      %p111 = por %p109, %p110
      %p112 = scmp.ne.s32.totalorder %s98, %s99
      %p113 = scmp.eq.s32.totalorder %s20, 1
      %p114 = por %p112, %p113
      %p116 = scmp.ne.s32.totalorder %s99, %s115
      %p117 = scmp.eq.s32.totalorder %s20, 0
      %p118 = por %p116, %p117
      %s120 = sadd.s32 %s119, 1
      %p123 = scmp.eq.s32.totalorder %s14, 1
      %p124 = scmp.ne.s32.totalorder %s119, %s121
      %p125 = scmp.eq.s32.totalorder %s14, 0
      %p126 = por %p124, %p125
      %p127 = scmp.ne.s32.totalorder %s119, %s121
      %p128 = scmp.eq.s32.totalorder %s19, 1
      %p129 = por %p127, %p128
      %p130 = scmp.ne.s32.totalorder %s121, %s122
      %p131 = scmp.eq.s32.totalorder %s19, 0
      %p132 = por %p130, %p131
      %p133 = scmp.ne.s32.totalorder %s121, %s122
      %p134 = scmp.eq.s32.totalorder %s20, 1
      %p135 = por %p133, %p134
      %p137 = scmp.ne.s32.totalorder %s122, %s136
      %p138 = scmp.eq.s32.totalorder %s20, 0
      %p139 = por %p137, %p138
      %s140 = ssub.s32 %s23, %s32
      %p141 = scmp.eq.s32.totalorder %s140, 0
      %s143 = sadd.s32 %s142, 1
      %s144 = scalar_select %p141, %s142, %s143
      %p147 = pneg %p141
      %p148 = scmp.eq.s32.totalorder %s14, 1
      %p149 = por %p147, %p148
      %p150 = scmp.ne.s32.totalorder %s142, %s145
      %p151 = scmp.eq.s32.totalorder %s14, 0
      %p152 = por %p150, %p151
      %p153 = scmp.ne.s32.totalorder %s142, %s145
      %p154 = scmp.eq.s32.totalorder %s19, 1
      %p155 = por %p153, %p154
      %p156 = scmp.ne.s32.totalorder %s145, %s146
      %p157 = scmp.eq.s32.totalorder %s19, 0
      %p158 = por %p156, %p157
      %p159 = scmp.ne.s32.totalorder %s145, %s146
      %p160 = scmp.eq.s32.totalorder %s20, 1
      %p161 = por %p159, %p160
      %p163 = scmp.ne.s32.totalorder %s146, %s162
      %p164 = scmp.eq.s32.totalorder %s20, 0
      %p165 = por %p163, %p164
      %s166 = ssub.s32 %s21, %s40
      %s167 = ssub.s32 %s22, %s36
      %s168 = sor.u32 %s166, %s167
      %s169 = ssub.s32 %s23, %s32
      %s170 = sor.u32 %s168, %s169
      %p171 = scmp.eq.s32.totalorder %s170, 0
      %s173 = sadd.s32 %s172, 1
      %s174 = scalar_select %p171, %s172, %s173
      %p177 = pneg %p171
      %p178 = scmp.eq.s32.totalorder %s14, 1
      %p179 = por %p177, %p178
      %p180 = scmp.ne.s32.totalorder %s172, %s175
      %p181 = scmp.eq.s32.totalorder %s14, 0
      %p182 = por %p180, %p181
      %p183 = scmp.ne.s32.totalorder %s172, %s175
      %p184 = scmp.eq.s32.totalorder %s19, 1
      %p185 = por %p183, %p184
      %p186 = scmp.ne.s32.totalorder %s175, %s176
      %p187 = scmp.eq.s32.totalorder %s19, 0
      %p188 = por %p186, %p187
      %p189 = scmp.ne.s32.totalorder %s175, %s176
      %p190 = scmp.eq.s32.totalorder %s20, 1
      %p191 = por %p189, %p190
      %p193 = scmp.ne.s32.totalorder %s176, %s192
      %p194 = scmp.eq.s32.totalorder %s20, 0
      %p195 = por %p193, %p194
      %p196 = scmp.le.s32.totalorder 1, %s14
      %p197 = scmp.lt.s32.totalorder %s14, 3
      %p198 = pnand %p196, %p197
      %p199 = pneg %p198
      // Predicated region
      $region9: #{tpu_custom_call.1} parent=5 // pred_check
        _
      $region10: #{tpu_custom_call.1} parent=5 // pred_check_branch
        %201 = sbr.rel (%p198) target = $region12
      $region11: #{tpu_custom_call.1} parent=5 // pred_region
        %s202 = ssub.s32 %s14, 1
        // Predicated region
        $region13: #{tpu_custom_call.1} parent=11 // pred_check
          %p203 = pneg %p85
        $region14: #{tpu_custom_call.1} parent=11 // pred_check_branch
          %205 = sbr.rel (%p203) target = $region16
        $region15: #{tpu_custom_call.1} parent=11 // pred_region
          %p206 = scmp.lt.s32.totalorder %s25, 0
          %s207 = scalar_select %p206, %s25, 0
          %s208 = smul.addr %s207, 4
          %s209 = scalar_lea.vmem %s1, %s208
        $region16: #{tpu_custom_call.1} parent=11 // pred_fallthru
          _
        // Predicated region
        $region17: #{tpu_custom_call.1} parent=11 // pred_check
          %p210 = pneg %p111
        $region18: #{tpu_custom_call.1} parent=11 // pred_check_branch
          %212 = sbr.rel (%p210) target = $region20
        $region19: #{tpu_custom_call.1} parent=11 // pred_region
          %p213 = scmp.lt.s32.totalorder %s25, 0
          %s214 = scalar_select %p213, %s25, 0
          %s215 = smul.addr %s214, 8
          %s216 = scalar_lea.vmem %s2, %s215
        $region20: #{tpu_custom_call.1} parent=11 // pred_fallthru
          _
        // Predicated region
        $region21: #{tpu_custom_call.1} parent=11 // pred_check
          %p217 = pneg %p132
        $region22: #{tpu_custom_call.1} parent=11 // pred_check_branch
          %219 = sbr.rel (%p217) target = $region24
        $region23: #{tpu_custom_call.1} parent=11 // pred_region
          _
        $region24: #{tpu_custom_call.1} parent=11 // pred_fallthru
          _
        // Predicated region
        $region25: #{tpu_custom_call.1} parent=11 // pred_check
          %p220 = pneg %p158
        $region26: #{tpu_custom_call.1} parent=11 // pred_check_branch
          %222 = sbr.rel (%p220) target = $region28
        $region27: #{tpu_custom_call.1} parent=11 // pred_region
          %s223 = smul.u32 2, %s26
          %p224 = scmp.lt.s32.totalorder %s223, 1
          %s225 = scalar_select %p224, %s223, 1
          %s226 = smul.addr %s225, 4
          %s227 = scalar_lea.vmem %s4, %s226
          %s228 = smul.u32 2, %s26
        $region28: #{tpu_custom_call.1} parent=11 // pred_fallthru
          _
      $region12: #{tpu_custom_call.1} parent=5 // pred_fallthru
        _
      %p229 = scmp.lt.s32.totalorder %s14, 2
      // Predicated region
      $region29: #{tpu_custom_call.1} parent=5 // pred_check
        %p230 = pneg %p229
      $region30: #{tpu_custom_call.1} parent=5 // pred_check_branch
        %232 = sbr.rel (%p230) target = $region32
      $region31: #{tpu_custom_call.1} parent=5 // pred_region
        // Predicated region
        $region33: #{tpu_custom_call.1} parent=31 // pred_check
          %p233 = pneg %p53
        $region34: #{tpu_custom_call.1} parent=31 // pred_check_branch
          %235 = sbr.rel (%p233) target = $region36
        $region35: #{tpu_custom_call.1} parent=31 // pred_region
          %p236 = scmp.lt.s32.totalorder %s21, 1
          %s237 = scalar_select %p236, %s21, 1
          %s238 = smul.addr %s237, 4
          %s239 = smul.addr %s238, 4
          %s240 = scalar_lea.vmem %s0, %s239
        $region36: #{tpu_custom_call.1} parent=31 // pred_fallthru
          _
      $region32: #{tpu_custom_call.1} parent=5 // pred_fallthru
        _
      %p241 = scmp.le.s32.totalorder 1, %s14
      %p242 = scmp.lt.s32.totalorder %s14, 3
      %p243 = pnand %p241, %p242
      %p244 = pneg %p243
      // Predicated region
      $region37: #{tpu_custom_call.1} parent=5 // pred_check
        _
      $region38: #{tpu_custom_call.1} parent=5 // pred_check_branch
        %246 = sbr.rel (%p243) target = $region40
      $region39: #{tpu_custom_call.1} parent=5 // pred_region
        %s247 = ssub.s32 %s14, 1
        %p248 = scmp.lt.s32.totalorder %s24, 1
        %s249 = scalar_select %p248, %s24, 1
        %s250 = smul.addr %s249, 4
        %s251 = smul.addr %s250, 4
        %s252 = scalar_lea.vmem %s0, %s251
        %p253 = pneg %p59
        %p254 = pneg %p56
        %p255 = scmp.lt.s32.totalorder %s25, 0
        %s256 = scalar_select %p255, %s25, 0
        %s257 = smul.addr %s256, 4
        %s258 = scalar_lea.vmem %s1, %s257
        %p259 = pneg %p85
        %p260 = pneg %p82
        %p261 = scmp.lt.s32.totalorder %s25, 0
        %s262 = scalar_select %p261, %s25, 0
        %s263 = smul.addr %s262, 8
        %s264 = scalar_lea.vmem %s2, %s263
        %p265 = pneg %p111
        %p266 = pneg %p108
        %p267 = pneg %p132
        %p268 = pneg %p129
        %s269 = smul.u32 2, %s26
        %p270 = scmp.lt.s32.totalorder %s269, 1
        %s271 = scalar_select %p270, %s269, 1
        %s272 = smul.addr %s271, 4
        %s273 = scalar_lea.vmem %s4, %s272
        %p274 = pneg %p158
        %p275 = pneg %p155
        %p276 = pneg %p188
        %p277 = pneg %p185
        %s278 = sand.u32 %s175, 1
        %s279 = scalar_lea.sflag [#allocation4], %s278
        %s280 = sand.u32 %s175, 1
        %s281 = smul.addr %s280, 128
        %s282 = scalar_lea.vmem [#allocation3], %s281
        %p283 = scmp.lt.s32.totalorder %s24, 1
        %s284 = scalar_select %p283, %s24, 1
        %s285 = smul.addr %s284, 4
        %s286 = smul.addr %s285, 4
        %s287 = scalar_lea.vmem %s0, %s286
        %p288 = scmp.lt.s32.totalorder %s25, 0
        %s289 = scalar_select %p288, %s25, 0
        %s290 = smul.addr %s289, 4
        %s291 = scalar_lea.vmem %s1, %s290
        %p292 = scmp.lt.s32.totalorder %s25, 0
        %s293 = scalar_select %p292, %s25, 0
        %s294 = smul.addr %s293, 8
        %s295 = scalar_lea.vmem %s2, %s294
        %s296 = smul.u32 2, %s26
        %p297 = scmp.lt.s32.totalorder %s296, 1
        %s298 = scalar_select %p297, %s296, 1
        %s299 = smul.addr %s298, 4
        %s300 = scalar_lea.vmem %s4, %s299
        %s301 = smul.u32 2, %s26
        %s302 = smul.u32 8, %s25
        %s303 = smul.u32 2, %s26
        %p305 = scmp.eq.s32.totalorder %s26, 0
        // Predicated region
        $region41: #{tpu_custom_call.1} parent=39 // pred_check
          %p306 = pneg %p305
        $region42: #{tpu_custom_call.1} parent=39 // pred_check_branch
          %308 = sbr.rel (%p306) target = $region44
        $region43: #{tpu_custom_call.1} parent=39 // pred_region
          %v309 = vld [vmem:[%s291] sm:$0xf]
          %v310 = vld [vmem:[%s287] sm:$0xf]
          %v311 = vld [vmem:[%s287 + $0x4] sm:$0xf]
          %v312 = vld [vmem:[%s287 + $0x8] sm:$0xf]
          %v313 = vld [vmem:[%s287 + $0xc] sm:$0xf]
          %v314 = vld [vmem:[%s295] sm:$0xff]
          %316 = vset.pattern.permute.xlu0 0
          %317 = vperm.xlu0 %316, %v314
          %v318 = vpop.permute.xlu0 %317
          %v324 = vunpack.c.l.b16 %v310
          %v325 = vunpack.c.l.b16 %v311
          %v326 = vunpack.c.l.b16 %v312
          %v327 = vunpack.c.l.b16 %v313
          %v328 = vpack.c.b16 %v325, %v324
          %v329 = vpack.c.b16 %v327, %v326
          %vm332 = vcmask 261120
          %v334 = vsel %vm332, %v309, 0
          %336 = vmatprep.subr.bf16.mxu0 0
          %337 = vmatpush1.bf16.msra.mxu0 %v328
          %338 = vmatprep.subr.bf16.mxu0 0
          %339 = vmatpush1.bf16.msra.mxu0 %v329
          %340 = vmatprep.subr.bf16.mxu0 0
          %341 = vmatpush1.bf16.msra.mxu0 0
          %342 = vmatprep.subr.bf16.mxu0 0
          %343 = vmatpush1.bf16.msra.mxu0 0
          %344 = vmatprep.subr.bf16.mxu0 0
          %345 = vmatpush1.bf16.msra.mxu0 0
          %346 = vmatprep.subr.bf16.mxu0 0
          %347 = vmatpush1.bf16.msra.mxu0 0
          %348 = vmatprep.subr.bf16.mxu0 0
          %349 = vmatpush1.bf16.msra.mxu0 0
          %350 = vmatprep.subr.bf16.mxu0 0
          %351 = vmatpush1.bf16.msra.mxu0 0
          %352 = vmatprep.subr.bf16.mxu0 0
          %353 = vmatpush1.bf16.msra.mxu0 0
          %354 = vmatprep.subr.bf16.mxu0 0
          %355 = vmatpush1.bf16.msra.mxu0 0
          %356 = vmatprep.subr.bf16.mxu0 0
          %357 = vmatpush1.bf16.msra.mxu0 0
          %358 = vmatprep.subr.bf16.mxu0 0
          %359 = vmatpush1.bf16.msra.mxu0 0
          %360 = vmatprep.subr.bf16.mxu0 0
          %361 = vmatpush1.bf16.msra.mxu0 0
          %362 = vmatprep.subr.bf16.mxu0 0
          %363 = vmatpush1.bf16.msra.mxu0 0
          %364 = vmatprep.subr.bf16.mxu0 0
          %365 = vmatpush1.bf16.msra.mxu0 0
          %366 = vmatprep.subr.bf16.mxu0 0
          %367 = vmatpush1.bf16.msra.mxu0 0
          %368 = vmatprep.mubr.bf16.mxu0 0
          %369 = vmatmul.mubr.bf16.gmra.mrb[0].mxu0 %v334
          %v370 = vpop.f32.mrb[0].mxu0
          %v371 = vadd.f32 %v318, %v370
          %v372 = vpop.f32.mrb[0].mxu0
          %v373 = vpop.f32.mrb[0].mxu0
          %v374 = vpop.f32.mrb[0].mxu0
          %375 = vdwg.mxu0
          %v376 = vpack.c.bf16 %v371, %v371
          %v377 = vld [vmem:[%s3] sm:$0x3]
          %vm378 = vcmask 31744
          %v380 = vsel %vm378, %v376, 0
          %vm382 = vcmask 1041408
          %v384 = vsel %vm382, %v377, 0
          %386 = vmatprep.subr.bf16.mxu0 0
          %387 = vmatpush1.bf16.msra.mxu0 %v384
          %388 = vmatprep.subr.bf16.mxu0 0
          %389 = vmatpush1.bf16.msra.mxu0 0
          %390 = vmatprep.subr.bf16.mxu0 0
          %391 = vmatpush1.bf16.msra.mxu0 0
          %392 = vmatprep.subr.bf16.mxu0 0
          %393 = vmatpush1.bf16.msra.mxu0 0
          %394 = vmatprep.subr.bf16.mxu0 0
          %395 = vmatpush1.bf16.msra.mxu0 0
          %396 = vmatprep.subr.bf16.mxu0 0
          %397 = vmatpush1.bf16.msra.mxu0 0
          %398 = vmatprep.subr.bf16.mxu0 0
          %399 = vmatpush1.bf16.msra.mxu0 0
          %400 = vmatprep.subr.bf16.mxu0 0
          %401 = vmatpush1.bf16.msra.mxu0 0
          %402 = vmatprep.subr.bf16.mxu0 0
          %403 = vmatpush1.bf16.msra.mxu0 0
          %404 = vmatprep.subr.bf16.mxu0 0
          %405 = vmatpush1.bf16.msra.mxu0 0
          %406 = vmatprep.subr.bf16.mxu0 0
          %407 = vmatpush1.bf16.msra.mxu0 0
          %408 = vmatprep.subr.bf16.mxu0 0
          %409 = vmatpush1.bf16.msra.mxu0 0
          %410 = vmatprep.subr.bf16.mxu0 0
          %411 = vmatpush1.bf16.msra.mxu0 0
          %412 = vmatprep.subr.bf16.mxu0 0
          %413 = vmatpush1.bf16.msra.mxu0 0
          %414 = vmatprep.subr.bf16.mxu0 0
          %415 = vmatpush1.bf16.msra.mxu0 0
          %416 = vmatprep.subr.bf16.mxu0 0
          %417 = vmatpush1.bf16.msra.mxu0 0
          %418 = vmatprep.mubr.bf16.mxu0 0
          %419 = vmatmul.mubr.bf16.gmra.mrb[0].mxu0 %v380
          %v420 = vpop.f32.mrb[0].mxu0
          %v421 = vadd.f32 0.0, %v420
          %v422 = vpop.f32.mrb[0].mxu0
          %v423 = vpop.f32.mrb[0].mxu0
          %v424 = vpop.f32.mrb[0].mxu0
          %425 = vdwg.mxu0
          %v426 = vpack.c.bf16 %v421, %v421
          %vm427 = vcmask 125952
          %428 = vst.msk [vmem:[#allocation2] sm:$0xf] %vm427, %v426
          %430 = vrot.lane.b32.xlu0 %v376, 124
          %v431 = vpop.permute.xlu0 %430
          %v433 = vsel %vm378, %v431, 0
          %435 = vmatprep.subr.bf16.mxu0 0
          %436 = vmatpush1.bf16.msra.mxu0 %v384
          %437 = vmatprep.subr.bf16.mxu0 0
          %438 = vmatpush1.bf16.msra.mxu0 0
          %439 = vmatprep.subr.bf16.mxu0 0
          %440 = vmatpush1.bf16.msra.mxu0 0
          %441 = vmatprep.subr.bf16.mxu0 0
          %442 = vmatpush1.bf16.msra.mxu0 0
          %443 = vmatprep.subr.bf16.mxu0 0
          %444 = vmatpush1.bf16.msra.mxu0 0
          %445 = vmatprep.subr.bf16.mxu0 0
          %446 = vmatpush1.bf16.msra.mxu0 0
          %447 = vmatprep.subr.bf16.mxu0 0
          %448 = vmatpush1.bf16.msra.mxu0 0
          %449 = vmatprep.subr.bf16.mxu0 0
          %450 = vmatpush1.bf16.msra.mxu0 0
          %451 = vmatprep.subr.bf16.mxu0 0
          %452 = vmatpush1.bf16.msra.mxu0 0
          %453 = vmatprep.subr.bf16.mxu0 0
          %454 = vmatpush1.bf16.msra.mxu0 0
          %455 = vmatprep.subr.bf16.mxu0 0
          %456 = vmatpush1.bf16.msra.mxu0 0
          %457 = vmatprep.subr.bf16.mxu0 0
          %458 = vmatpush1.bf16.msra.mxu0 0
          %459 = vmatprep.subr.bf16.mxu0 0
          %460 = vmatpush1.bf16.msra.mxu0 0
          %461 = vmatprep.subr.bf16.mxu0 0
          %462 = vmatpush1.bf16.msra.mxu0 0
          %463 = vmatprep.subr.bf16.mxu0 0
          %464 = vmatpush1.bf16.msra.mxu0 0
          %465 = vmatprep.subr.bf16.mxu0 0
          %466 = vmatpush1.bf16.msra.mxu0 0
          %467 = vmatprep.mubr.bf16.mxu0 0
          %468 = vmatmul.mubr.bf16.gmra.mrb[0].mxu0 %v433
          %v469 = vpop.f32.mrb[0].mxu0
          %v470 = vadd.f32 0.0, %v469
          %v471 = vpop.f32.mrb[0].mxu0
          %v472 = vpop.f32.mrb[0].mxu0
          %v473 = vpop.f32.mrb[0].mxu0
          %474 = vdwg.mxu0
          %v475 = vpack.c.bf16 %v470, %v470
          %s476 = scalar_lea.vmem [#allocation2], 4
          %477 = vst.msk [vmem:[%s476] sm:$0xf] %vm427, %v475
          %478 = vrot.lane.b32.xlu0 %v376, 120
          %v479 = vpop.permute.xlu0 %478
          %v481 = vsel %vm378, %v479, 0
          %483 = vmatprep.subr.bf16.mxu0 0
          %484 = vmatpush1.bf16.msra.mxu0 %v384
          %485 = vmatprep.subr.bf16.mxu0 0
          %486 = vmatpush1.bf16.msra.mxu0 0
          %487 = vmatprep.subr.bf16.mxu0 0
          %488 = vmatpush1.bf16.msra.mxu0 0
          %489 = vmatprep.subr.bf16.mxu0 0
          %490 = vmatpush1.bf16.msra.mxu0 0
          %491 = vmatprep.subr.bf16.mxu0 0
          %492 = vmatpush1.bf16.msra.mxu0 0
          %493 = vmatprep.subr.bf16.mxu0 0
          %494 = vmatpush1.bf16.msra.mxu0 0
          %495 = vmatprep.subr.bf16.mxu0 0
          %496 = vmatpush1.bf16.msra.mxu0 0
          %497 = vmatprep.subr.bf16.mxu0 0
          %498 = vmatpush1.bf16.msra.mxu0 0
          %499 = vmatprep.subr.bf16.mxu0 0
          %500 = vmatpush1.bf16.msra.mxu0 0
          %501 = vmatprep.subr.bf16.mxu0 0
          %502 = vmatpush1.bf16.msra.mxu0 0
          %503 = vmatprep.subr.bf16.mxu0 0
          %504 = vmatpush1.bf16.msra.mxu0 0
          %505 = vmatprep.subr.bf16.mxu0 0
          %506 = vmatpush1.bf16.msra.mxu0 0
          %507 = vmatprep.subr.bf16.mxu0 0
          %508 = vmatpush1.bf16.msra.mxu0 0
          %509 = vmatprep.subr.bf16.mxu0 0
          %510 = vmatpush1.bf16.msra.mxu0 0
          %511 = vmatprep.subr.bf16.mxu0 0
          %512 = vmatpush1.bf16.msra.mxu0 0
          %513 = vmatprep.subr.bf16.mxu0 0
          %514 = vmatpush1.bf16.msra.mxu0 0
          %515 = vmatprep.mubr.bf16.mxu0 0
          %516 = vmatmul.mubr.bf16.gmra.mrb[0].mxu0 %v481
          %v517 = vpop.f32.mrb[0].mxu0
          %v518 = vadd.f32 0.0, %v517
          %v519 = vpop.f32.mrb[0].mxu0
          %v520 = vpop.f32.mrb[0].mxu0
          %v521 = vpop.f32.mrb[0].mxu0
          %522 = vdwg.mxu0
          %v523 = vpack.c.bf16 %v518, %v518
          %s524 = scalar_lea.vmem [#allocation2], 8
          %525 = vst.msk [vmem:[%s524] sm:$0xf] %vm427, %v523
          %526 = vrot.lane.b32.xlu0 %v376, 116
          %v527 = vpop.permute.xlu0 %526
          %v529 = vsel %vm378, %v527, 0
          %531 = vmatprep.subr.bf16.mxu0 0
          %532 = vmatpush1.bf16.msra.mxu0 %v384
          %533 = vmatprep.subr.bf16.mxu0 0
          %534 = vmatpush1.bf16.msra.mxu0 0
          %535 = vmatprep.subr.bf16.mxu0 0
          %536 = vmatpush1.bf16.msra.mxu0 0
          %537 = vmatprep.subr.bf16.mxu0 0
          %538 = vmatpush1.bf16.msra.mxu0 0
          %539 = vmatprep.subr.bf16.mxu0 0
          %540 = vmatpush1.bf16.msra.mxu0 0
          %541 = vmatprep.subr.bf16.mxu0 0
          %542 = vmatpush1.bf16.msra.mxu0 0
          %543 = vmatprep.subr.bf16.mxu0 0
          %544 = vmatpush1.bf16.msra.mxu0 0
          %545 = vmatprep.subr.bf16.mxu0 0
          %546 = vmatpush1.bf16.msra.mxu0 0
          %547 = vmatprep.subr.bf16.mxu0 0
          %548 = vmatpush1.bf16.msra.mxu0 0
          %549 = vmatprep.subr.bf16.mxu0 0
          %550 = vmatpush1.bf16.msra.mxu0 0
          %551 = vmatprep.subr.bf16.mxu0 0
          %552 = vmatpush1.bf16.msra.mxu0 0
          %553 = vmatprep.subr.bf16.mxu0 0
          %554 = vmatpush1.bf16.msra.mxu0 0
          %555 = vmatprep.subr.bf16.mxu0 0
          %556 = vmatpush1.bf16.msra.mxu0 0
          %557 = vmatprep.subr.bf16.mxu0 0
          %558 = vmatpush1.bf16.msra.mxu0 0
          %559 = vmatprep.subr.bf16.mxu0 0
          %560 = vmatpush1.bf16.msra.mxu0 0
          %561 = vmatprep.subr.bf16.mxu0 0
          %562 = vmatpush1.bf16.msra.mxu0 0
          %563 = vmatprep.mubr.bf16.mxu0 0
          %564 = vmatmul.mubr.bf16.gmra.mrb[0].mxu0 %v529
          %v565 = vpop.f32.mrb[0].mxu0
          %v566 = vadd.f32 0.0, %v565
          %v567 = vpop.f32.mrb[0].mxu0
          %v568 = vpop.f32.mrb[0].mxu0
          %v569 = vpop.f32.mrb[0].mxu0
          %570 = vdwg.mxu0
          %v571 = vpack.c.bf16 %v566, %v566
          %s572 = scalar_lea.vmem [#allocation2], 12
          %573 = vst.msk [vmem:[%s572] sm:$0xf] %vm427, %v571
        $region44: #{tpu_custom_call.1} parent=39 // pred_fallthru
          _
        %v574 = vld [vmem:[%s300] sm:$0xf]
        %v575 = vld [vmem:[%s300 + $0x4] sm:$0xf]
        %v576 = vld [vmem:[#allocation2] sm:$0xf]
        %v577 = vld [vmem:[#allocation2 + $0x4] sm:$0xf]
        %v578 = vld [vmem:[#allocation2 + $0x8] sm:$0xf]
        %v579 = vld [vmem:[#allocation2 + $0xc] sm:$0xf]
        %v582 = vpack.i.b16 %v577, %v576
        %v583 = vshrl.u32 %v576, 16
        %v584 = vshrl.u32 %v577, 16
        %v585 = vpack.i.b16 %v584, %v583
        %v588 = vpack.i.b16 %v579, %v578
        %v589 = vshrl.u32 %v578, 16
        %v590 = vshrl.u32 %v579, 16
        %v591 = vpack.i.b16 %v590, %v589
        %v594 = vunpack.c.l.s4 1983009808
        %v595 = vunpack.c.0.s8 %v594
        %v596 = vlaneseq
        %v597 = vshrl.u32 %v596, 7
        %v598 = vsub.s32 %v595, %v597
        %v599 = vrot.slane %v582, %v598
        %v602 = vunpack.c.l.s4 1983009808
        %v603 = vunpack.c.0.s8 %v602
        %v604 = vlaneseq
        %v605 = vshrl.u32 %v604, 7
        %v606 = vsub.s32 %v603, %v605
        %v607 = vrot.slane %v588, %v606
        %v608 = vcombine.low %v599, %v607
        %v609 = vcombine.high %v599, %v607
        %v611 = vunpack.c.l.s4 1934713408
        %v612 = vunpack.c.0.s8 %v611
        %v613 = vlaneseq
        %v614 = vshrl.u32 %v613, 7
        %v615 = vsub.s32 %v612, %v614
        %v616 = vrot.slane %v608, %v615
        %v618 = vunpack.c.l.s4 1934713408
        %v619 = vunpack.c.0.s8 %v618
        %v620 = vlaneseq
        %v621 = vshrl.u32 %v620, 7
        %v622 = vsub.s32 %v619, %v621
        %v623 = vrot.slane %v609, %v622
        %v624 = vcombine.high %v616, 0
        %v625 = vcombine.high %v623, 0
        %v628 = vunpack.c.l.s4 1983009808
        %v629 = vunpack.c.0.s8 %v628
        %v630 = vlaneseq
        %v631 = vshrl.u32 %v630, 7
        %v632 = vsub.s32 %v629, %v631
        %v633 = vrot.slane %v585, %v632
        %v636 = vunpack.c.l.s4 1983009808
        %v637 = vunpack.c.0.s8 %v636
        %v638 = vlaneseq
        %v639 = vshrl.u32 %v638, 7
        %v640 = vsub.s32 %v637, %v639
        %v641 = vrot.slane %v591, %v640
        %v642 = vcombine.low %v633, %v641
        %v643 = vcombine.high %v633, %v641
        %v645 = vunpack.c.l.s4 1934713408
        %v646 = vunpack.c.0.s8 %v645
        %v647 = vlaneseq
        %v648 = vshrl.u32 %v647, 7
        %v649 = vsub.s32 %v646, %v648
        %v650 = vrot.slane %v642, %v649
        %v652 = vunpack.c.l.s4 1934713408
        %v653 = vunpack.c.0.s8 %v652
        %v654 = vlaneseq
        %v655 = vshrl.u32 %v654, 7
        %v656 = vsub.s32 %v653, %v655
        %v657 = vrot.slane %v643, %v656
        %v658 = vcombine.high %v650, 0
        %v659 = vcombine.high %v657, 0
        %v661 = vunpack.c.l.b16 %v650
        %v662 = vpack.c.b16 %v661, %v661
        %663 = vrot.lane.b32.xlu0 %v662, 16
        %v664 = vpop.permute.xlu0 %663
        %v666 = vunpack.c.l.b16 %v624
        %v667 = vpack.c.b16 %v666, %v666
        %668 = vrot.lane.b32.xlu0 %v667, 32
        %v669 = vpop.permute.xlu0 %668
        %v671 = vunpack.c.l.b16 %v658
        %v672 = vpack.c.b16 %v671, %v671
        %673 = vrot.lane.b32.xlu0 %v672, 48
        %v674 = vpop.permute.xlu0 %673
        %v676 = vunpack.c.l.b16 %v623
        %v677 = vpack.c.b16 %v676, %v676
        %678 = vrot.lane.b32.xlu0 %v677, 64
        %v679 = vpop.permute.xlu0 %678
        %v681 = vunpack.c.l.b16 %v657
        %v682 = vpack.c.b16 %v681, %v681
        %683 = vrot.lane.b32.xlu0 %v682, 80
        %v684 = vpop.permute.xlu0 %683
        %v686 = vunpack.c.l.b16 %v625
        %v687 = vpack.c.b16 %v686, %v686
        %688 = vrot.lane.b32.xlu0 %v687, 96
        %v689 = vpop.permute.xlu0 %688
        %v691 = vunpack.c.l.b16 %v659
        %v692 = vpack.c.b16 %v691, %v691
        %693 = vrot.lane.b32.xlu0 %v692, 112
        %v694 = vpop.permute.xlu0 %693
        %vm695 = vcmask 130048
        %v698 = vsel %vm695, %v616, %v664
        %vm699 = vcmask 261120
        %v701 = vsel %vm699, %v698, %v669
        %vm702 = vcmask 392192
        %v704 = vsel %vm702, %v701, %v674
        %vm705 = vcmask 523264
        %v707 = vsel %vm705, %v704, %v679
        %vm708 = vcmask 654336
        %v710 = vsel %vm708, %v707, %v684
        %vm711 = vcmask 785408
        %v713 = vsel %vm711, %v710, %v689
        %vm714 = vcmask 916480
        %v716 = vsel %vm714, %v713, %v694
        %v719 = vunpack.c.l.b16 %v574
        %v720 = vunpack.c.l.b16 %v575
        %v721 = vpack.c.b16 %v720, %v719
        %vm722 = vcmask 31744
        %v724 = vsel %vm722, %v721, 0
        %vm726 = vcmask 1041408
        %v727 = vsel %vm726, %v716, 0
        %729 = vmatprep.subr.bf16.mxu0 0
        %730 = vmatpush1.bf16.msra.mxu0 %v727
        %731 = vmatprep.subr.bf16.mxu0 0
        %732 = vmatpush1.bf16.msra.mxu0 0
        %733 = vmatprep.subr.bf16.mxu0 0
        %734 = vmatpush1.bf16.msra.mxu0 0
        %735 = vmatprep.subr.bf16.mxu0 0
        %736 = vmatpush1.bf16.msra.mxu0 0
        %737 = vmatprep.subr.bf16.mxu0 0
        %738 = vmatpush1.bf16.msra.mxu0 0
        %739 = vmatprep.subr.bf16.mxu0 0
        %740 = vmatpush1.bf16.msra.mxu0 0
        %741 = vmatprep.subr.bf16.mxu0 0
        %742 = vmatpush1.bf16.msra.mxu0 0
        %743 = vmatprep.subr.bf16.mxu0 0
        %744 = vmatpush1.bf16.msra.mxu0 0
        %745 = vmatprep.subr.bf16.mxu0 0
        %746 = vmatpush1.bf16.msra.mxu0 0
        %747 = vmatprep.subr.bf16.mxu0 0
        %748 = vmatpush1.bf16.msra.mxu0 0
        %749 = vmatprep.subr.bf16.mxu0 0
        %750 = vmatpush1.bf16.msra.mxu0 0
        %751 = vmatprep.subr.bf16.mxu0 0
        %752 = vmatpush1.bf16.msra.mxu0 0
        %753 = vmatprep.subr.bf16.mxu0 0
        %754 = vmatpush1.bf16.msra.mxu0 0
        %755 = vmatprep.subr.bf16.mxu0 0
        %756 = vmatpush1.bf16.msra.mxu0 0
        %757 = vmatprep.subr.bf16.mxu0 0
        %758 = vmatpush1.bf16.msra.mxu0 0
        %759 = vmatprep.subr.bf16.mxu0 0
        %760 = vmatpush1.bf16.msra.mxu0 0
        %761 = vmatprep.mubr.bf16.mxu0 0
        %762 = vmatmul.mubr.bf16.gmra.mrb[0].mxu0 %v724
        %v763 = vpop.f32.mrb[0].mxu0
        %v764 = vadd.f32 0.0, %v763
        %v765 = vpop.f32.mrb[0].mxu0
        %v766 = vpop.f32.mrb[0].mxu0
        %v767 = vadd.f32 0.0, %v766
        %v768 = vpop.f32.mrb[0].mxu0
        %769 = vdwg.mxu0
        %770 = vst.msk [vmem:[%s282] sm:$0xff] %vm695, %v764
        %771 = vst.msk [vmem:[%s282 + $0x8] sm:$0xff] %vm695, %v767
        %774 = vrot.lane.b32.xlu0 %v764, 112
        %v775 = vpop.permute.xlu0 %774
        %776 = vrot.lane.b32.xlu0 %v767, 112
        %v777 = vpop.permute.xlu0 %776
        %s780 = scalar_lea.vmem %s282, 16 [#allocation3]
        %781 = vst.msk [vmem:[%s780] sm:$0xff] %vm695, %v775
        %782 = vst.msk [vmem:[%s780 + $0x8] sm:$0xff] %vm695, %v777
        %783 = vrot.lane.b32.xlu0 %v764, 96
        %v784 = vpop.permute.xlu0 %783
        %785 = vrot.lane.b32.xlu0 %v767, 96
        %v786 = vpop.permute.xlu0 %785
        %s789 = scalar_lea.vmem %s282, 32 [#allocation3]
        %790 = vst.msk [vmem:[%s789] sm:$0xff] %vm695, %v784
        %791 = vst.msk [vmem:[%s789 + $0x8] sm:$0xff] %vm695, %v786
        %792 = vrot.lane.b32.xlu0 %v764, 80
        %v793 = vpop.permute.xlu0 %792
        %794 = vrot.lane.b32.xlu0 %v767, 80
        %v795 = vpop.permute.xlu0 %794
        %s798 = scalar_lea.vmem %s282, 48 [#allocation3]
        %799 = vst.msk [vmem:[%s798] sm:$0xff] %vm695, %v793
        %800 = vst.msk [vmem:[%s798 + $0x8] sm:$0xff] %vm695, %v795
        %801 = vrot.lane.b32.xlu0 %v764, 64
        %v802 = vpop.permute.xlu0 %801
        %803 = vrot.lane.b32.xlu0 %v767, 64
        %v804 = vpop.permute.xlu0 %803
        %s807 = scalar_lea.vmem %s282, 64 [#allocation3]
        %808 = vst.msk [vmem:[%s807] sm:$0xff] %vm695, %v802
        %809 = vst.msk [vmem:[%s807 + $0x8] sm:$0xff] %vm695, %v804
        %810 = vrot.lane.b32.xlu0 %v764, 48
        %v811 = vpop.permute.xlu0 %810
        %812 = vrot.lane.b32.xlu0 %v767, 48
        %v813 = vpop.permute.xlu0 %812
        %s816 = scalar_lea.vmem %s282, 80 [#allocation3]
        %817 = vst.msk [vmem:[%s816] sm:$0xff] %vm695, %v811
        %818 = vst.msk [vmem:[%s816 + $0x8] sm:$0xff] %vm695, %v813
        %819 = vrot.lane.b32.xlu0 %v764, 32
        %v820 = vpop.permute.xlu0 %819
        %821 = vrot.lane.b32.xlu0 %v767, 32
        %v822 = vpop.permute.xlu0 %821
        %s825 = scalar_lea.vmem %s282, 96 [#allocation3]
        %826 = vst.msk [vmem:[%s825] sm:$0xff] %vm695, %v820
        %827 = vst.msk [vmem:[%s825 + $0x8] sm:$0xff] %vm695, %v822
        %828 = vrot.lane.b32.xlu0 %v764, 16
        %v829 = vpop.permute.xlu0 %828
        %830 = vrot.lane.b32.xlu0 %v767, 16
        %v831 = vpop.permute.xlu0 %830
        %s834 = scalar_lea.vmem %s282, 112 [#allocation3]
        %835 = vst.msk [vmem:[%s834] sm:$0xff] %vm695, %v829
        %836 = vst.msk [vmem:[%s834 + $0x8] sm:$0xff] %vm695, %v831
        %s837 = sand.u32 %s175, 1
        %s838 = scalar_lea.sflag [#allocation4], %s837
        %s839 = sand.u32 %s175, 1
        %s840 = smul.addr %s839, 128
        %s841 = scalar_lea.vmem [#allocation3], %s840
        // Predicated region
        $region45: #{tpu_custom_call.1} parent=39 // pred_check
          %p842 = pneg %p185
        $region46: #{tpu_custom_call.1} parent=39 // pred_check_branch
          %844 = sbr.rel (%p842) target = $region48
        $region47: #{tpu_custom_call.1} parent=39 // pred_region
          %s845 = smul.u32 8, %s25
          %s846 = smul.u32 2, %s26
          %s848 = ssub.s32 2048, 2048
          %849 = vsyncadd %s838, %s848
          %s850 = smul.addr %s845, 2
          %s851 = sadd.s32 %s846, %s850
          %s852 = smul.addr %s24, 16
          %s853 = sadd.s32 %s851, %s852
          %s854 = smul.addr %s853, 128
          %s855 = scalar_lea.hbm %s5, %s854
          %s856 = sshll.u32 %s841, 4
          %s857 = int_to_ptr.vmem [resolvable:$true] %s856
          %862 = dma.vmem_to_hbm [thread:$0]  %s857, 2048, %s855, %s838, 128, 128, 8
        $region48: #{tpu_custom_call.1} parent=39 // pred_fallthru
          _
      $region40: #{tpu_custom_call.1} parent=5 // pred_fallthru
        _
      %p863 = scmp.le.s32.totalorder 2, %s14
      // Predicated region
      $region49: #{tpu_custom_call.1} parent=5 // pred_check
        %p864 = pneg %p863
      $region50: #{tpu_custom_call.1} parent=5 // pred_check_branch
        %866 = sbr.rel (%p864) target = $region52
      $region51: #{tpu_custom_call.1} parent=5 // pred_region
        %s867 = ssub.s32 %s14, 2
        // Predicated region
        $region53: #{tpu_custom_call.1} parent=51 // pred_check
          %p868 = pneg %p191
        $region54: #{tpu_custom_call.1} parent=51 // pred_check_branch
          %870 = sbr.rel (%p868) target = $region56
        $region55: #{tpu_custom_call.1} parent=51 // pred_region
          %s871 = sand.u32 %s176, 1
          %s872 = scalar_lea.sflag [#allocation4], %s871
          %s873 = sand.u32 %s176, 1
          %s874 = smul.addr %s873, 128
          %s875 = scalar_lea.vmem [#allocation3], %s874
          %876 = dma.done %s872, 2048
        $region56: #{tpu_custom_call.1} parent=51 // pred_fallthru
          _
      $region52: #{tpu_custom_call.1} parent=5 // pred_fallthru
        _
    $region6: #{tpu_custom_call.1} parent=1 // loop_footer
      %s18 = sadd.s32 1, %s14
    $region7: #{tpu_custom_call.1} parent=1 // loop_footer_branch
      %13 = sbr.rel target = $region3
    $region8: #{tpu_custom_call.1} parent=1 // loop_exit
      _
    %877 = vsyncpa [#allocation4], 1
    %s878 = scalar_lea.sflag [#allocation4], 1
    %879 = vsyncpa %s878, 1

</llo_original>
